<compile_context>
chip_gen: v6e
topology: v6e:2x2x1
jax: 0.10.0
libtpu: 0.0.40
codegen_flags: <defaults>
</compile_context>

<pallas_src>
import functools
import math

import jax
import jax.numpy as jnp
from jax.experimental import pallas as pl
from jax.experimental.pallas import tpu as pltpu


# Minimum second-to-last (sublane) tile multiple per element width.
_SUBLANE_BY_ITEMSIZE = {4: 8, 2: 16, 1: 32}

# Explicit scoped-VMEM limit: safely below v7x's 64 MiB physical per-TC VMEM,
# above the 16/32 MiB scoped defaults on v5e/v6e so large tiles actually fit.
_VMEM_LIMIT_BYTES = 48 << 20
# Target working set (all operands, double-buffered) — leave headroom.
_VMEM_TILE_BUDGET = 24 << 20


def _sum_kernel(*refs):
    """Fused elementwise sum over all dict entries (accumulate in f32)."""
    *in_refs, o_ref = refs
    acc = in_refs[0][...].astype(jnp.float32)
    for r in in_refs[1:]:
        acc = acc + r[...].astype(jnp.float32)
    o_ref[...] = acc.astype(o_ref.dtype)


def _choose_layout(total, dtypes):
    """Pick (lanes, rows, tile_rows) for a lane-dense 2D view of the element stream.

    Returns None when no dtype-aligned layout exists (caller uses plain XLA).
    """
    itemsizes = [jnp.dtype(d).itemsize for d in dtypes]
    sublane = max(_SUBLANE_BY_ITEMSIZE.get(s, 8) for s in itemsizes)

    # Widest lane extent (multiple of 128) whose row count stays sublane-aligned.
    lanes = rows = None
    for cand in (2048, 1024, 512, 256, 128):
        if total % cand:
            continue
        r = total // cand
        if r % sublane == 0:
            lanes, rows = cand, r
            break
    if lanes is None:
        return None

    # Largest sublane-aligned divisor of rows whose double-buffered working set
    # (every input + the output) fits the VMEM budget.
    bytes_per_tile_row = 2 * lanes * sum(itemsizes)  # x2 for double buffering
    max_tile_rows = max(sublane, _VMEM_TILE_BUDGET // bytes_per_tile_row)
    divisors = [
        d
        for d in range(sublane, min(rows, max_tile_rows) + 1, sublane)
        if rows % d == 0
    ]
    if not divisors:
        return None
    # Prefer a tiling that leaves >= 2 grid steps (v7x megacore sharding).
    multi_step = [d for d in divisors if rows // d >= 2]
    tile_rows = max(multi_step) if multi_step else max(divisors)
    return lanes, rows, tile_rows


class PallasDictSum:
    """Module whose forward takes a dict of same-shaped arrays and returns their
    elementwise sum, fused into a single tiled Pallas pass."""

    def forward(self, inputs: dict) -> jax.Array:
        xs = list(inputs.values())
        shape = xs[0].shape
        for x in xs:
            assert x.shape == shape, "ListAdapter demo module expects equal shapes"
        out_dtype = jnp.result_type(*xs)
        total = math.prod(shape)

        layout = _choose_layout(total, [x.dtype for x in xs] + [out_dtype])
        if layout is None:
            # TODO(synk): totals that cannot be presented as a dtype-aligned
            # (rows, 128k) slab skip Pallas and use plain XLA (same semantics).
            return functools.reduce(
                lambda a, b: a + b, [x.astype(out_dtype) for x in xs]
            ).reshape(shape)

        lanes, rows, tile_rows = layout
        # Metadata-only reshapes (inputs are contiguous, row-major).
        xs2d = [x.reshape(rows, lanes) for x in xs]

        spec = pl.BlockSpec((tile_rows, lanes), lambda i: (i, 0))
        out2d = pl.pallas_call(
            _sum_kernel,
            out_shape=jax.ShapeDtypeStruct((rows, lanes), out_dtype),
            grid_spec=pltpu.PrefetchScalarGridSpec(
                num_scalar_prefetch=0,
                grid=(rows // tile_rows,),
                in_specs=[spec] * len(xs2d),
                out_specs=spec,
            ),
            compiler_params=pltpu.CompilerParams(
                dimension_semantics=("parallel",),
                vmem_limit_bytes=_VMEM_LIMIT_BYTES,
            ),
        )(*xs2d)
        return out2d.reshape(shape)  # metadata-only


class ListAdapter:
    """JAX/Pallas port of tako ListAdapter: adapts a module whose forward takes a
    dict so it can be called with keyword arguments.  Exactly like the PyTorch
    original, the adapter itself does no tensor work."""

    def __init__(self, module):
        self._module = module

    def forward(self, **inputs):
        return self._module.forward(inputs)

    __call__ = forward


if __name__ == "__main__":
    key = jax.random.PRNGKey(0)
    k1, k2, k3 = jax.random.split(key, 3)
    shape = (2, 4, 16, 16)  # NCHW, matching the PyTorch convention
    a = jax.random.normal(k1, shape, dtype=jnp.float32)
    b = jax.random.normal(k2, shape, dtype=jnp.float32)
    c = jax.random.normal(k3, shape, dtype=jnp.float32)

    adapter = ListAdapter(PallasDictSum())
    y = jax.block_until_ready(adapter.forward(a=a, b=b, c=c))

    ref = a + b + c
    assert y.shape == shape
    assert y.dtype == ref.dtype
    assert jnp.allclose(y, ref, atol=1e-6, rtol=1e-6)

    print("KERNEL_OK")
</pallas_src>

<mosaic_0001>
module attributes {stable_mosaic.version = 11 : i64} {
  func.func @_sum_kernel(%arg0: i32, %arg1: memref<8x256xf32, #tpu.memory_space<vmem>>, %arg2: memref<8x256xf32, #tpu.memory_space<vmem>>, %arg3: memref<8x256xf32, #tpu.memory_space<vmem>>, %arg4: memref<8x256xf32, #tpu.memory_space<vmem>>) attributes {dimension_semantics = [#tpu.dimension_semantics<parallel>], iteration_bounds = array<i64: 1>, scalar_prefetch = 0 : i64, scratch_operands = 0 : i64, tpu.core_type = #tpu.core_type<tc>, window_params = [{transform_indices = @transform_0, window_bounds = array<i64: 8, 256>}, {transform_indices = @transform_1, window_bounds = array<i64: 8, 256>}, {transform_indices = @transform_2, window_bounds = array<i64: 8, 256>}, {transform_indices = @transform_3, window_bounds = array<i64: 8, 256>}]} {
    %c0 = arith.constant 0 : index
    %c0_0 = arith.constant 0 : index
    %0 = vector.load %arg1[%c0, %c0_0] : memref<8x256xf32, #tpu.memory_space<vmem>>, vector<8x256xf32>
    %c0_1 = arith.constant 0 : index
    %c0_2 = arith.constant 0 : index
    %1 = vector.load %arg2[%c0_1, %c0_2] : memref<8x256xf32, #tpu.memory_space<vmem>>, vector<8x256xf32>
    %2 = arith.addf %0, %1 : vector<8x256xf32>
    %c0_3 = arith.constant 0 : index
    %c0_4 = arith.constant 0 : index
    %3 = vector.load %arg3[%c0_3, %c0_4] : memref<8x256xf32, #tpu.memory_space<vmem>>, vector<8x256xf32>
    %4 = arith.addf %2, %3 : vector<8x256xf32>
    %c0_5 = arith.constant 0 : index
    %c0_6 = arith.constant 0 : index
    %5 = vector.load %arg4[%c0_5, %c0_6] : memref<8x256xf32, #tpu.memory_space<vmem>>, vector<8x256xf32>
    tpu.vector_store %arg4[%c0_5, %c0_6], %4 {strides = array<i32>} : memref<8x256xf32, #tpu.memory_space<vmem>>, vector<8x256xf32>,
    return
  }
  func.func @transform_0(%arg0: i32) -> (i32, i32) {
    %c0_i32 = arith.constant 0 : i32
    %c0_i32_0 = arith.constant 0 : i32
    return %arg0, %c0_i32 : i32, i32
  }
  func.func @transform_1(%arg0: i32) -> (i32, i32) {
    %c0_i32 = arith.constant 0 : i32
    %c0_i32_0 = arith.constant 0 : i32
    return %arg0, %c0_i32 : i32, i32
  }
  func.func @transform_2(%arg0: i32) -> (i32, i32) {
    %c0_i32 = arith.constant 0 : i32
    %c0_i32_0 = arith.constant 0 : i32
    return %arg0, %c0_i32 : i32, i32
  }
  func.func @transform_3(%arg0: i32) -> (i32, i32) {
    %c0_i32 = arith.constant 0 : i32
    %c0_i32_0 = arith.constant 0 : i32
    return %arg0, %c0_i32 : i32, i32
  }
}

</mosaic_0001>

<llo_original>
// kernel: tpu_custom_call.1
$region0: #{tpu_custom_call.1}
  #allocation0 [shape = 'u32[]', space=smem, size = 0x4, offset = 0x4, fixed_abs, tag = 'smem constant byte address 0x4 - core index']
  #allocation1 [shape = 'u32[144,128]{1,0:T(1,128)}', space=vmem, size = 0x12000, scoped, tag = 'internal scratch']
  %s0 = inlined_call_operand.hbm [shape: f32[8,256], index: 0, kind: input, shape index: {}]
  %s1 = inlined_call_operand.hbm [shape: f32[8,256], index: 1, kind: input, shape index: {}]
  %s2 = inlined_call_operand.hbm [shape: f32[8,256], index: 2, kind: input, shape index: {}]
  %s3 = inlined_call_operand.hbm [shape: f32[8,256], index: 3, kind: output, shape index: {}]
  %s4 = sld [smem:[#allocation0]]
  $region34: #{tpu_custom_call.1} parent=0
    _
  %s6 = ssub.s32 1, %s4
  %s7 = scalar_select 0, %s6, %s4
  $region1: #{tpu_custom_call.1} parent=0
    #allocation2 [shape = 'u8[8192]{0}', space=vmem, size = 0x2000, scoped, tag = 'input window, operand 0, single buffered']
    #allocation3 [shape = 's32[1]{0}', space=sflag, size = 0x4, scoped, tag = 'scoped memory for tpu_custom_call.1']
    #allocation4 [shape = 's32[1]{0}', space=sflag, size = 0x4, scoped, tag = 'scoped memory for tpu_custom_call.1']
    #allocation5 [shape = 'u8[8192]{0}', space=vmem, size = 0x2000, scoped, tag = 'input window, operand 1, single buffered']
    #allocation6 [shape = 's32[1]{0}', space=sflag, size = 0x4, scoped, tag = 'scoped memory for tpu_custom_call.1']
    #allocation7 [shape = 'u8[8192]{0}', space=vmem, size = 0x2000, scoped, tag = 'input window, operand 2, single buffered']
    #allocation8 [shape = 'u8[8192]{0}', space=vmem, size = 0x2000, scoped, tag = 'output window, operand 0, single buffered']
    %8 = vsyncpa [#allocation3], 0
    %9 = vsyncpa [#allocation6], 0
    %10 = vsyncpa [#allocation4], 0
    // Predicated region
    $region2: #{tpu_custom_call.1} parent=1 // pred_check
      _
    $region3: #{tpu_custom_call.1} parent=1 // pred_check_branch
      %12 = sbr.rel (0) target = $region5
    $region4: #{tpu_custom_call.1} parent=1 // pred_region
      %s14 = ssub.s32 256, 256
      %15 = vsyncadd [#allocation3], %s14
      %s17 = sshll.u32 [#allocation2], 4
      %s18 = int_to_ptr.vmem [resolvable:$true] %s17
      %20 = dma.hbm_to_vmem [thread:$0]  %s0, 256, %s18, [#allocation3]
    $region5: #{tpu_custom_call.1} parent=1 // pred_fallthru
      _
    // Predicated region
    $region6: #{tpu_custom_call.1} parent=1 // pred_check
      _
    $region7: #{tpu_custom_call.1} parent=1 // pred_check_branch
      %22 = sbr.rel (0) target = $region9
    $region8: #{tpu_custom_call.1} parent=1 // pred_region
      %s24 = ssub.s32 256, 256
      %25 = vsyncadd [#allocation6], %s24
      %s27 = sshll.u32 [#allocation5], 4
      %s28 = int_to_ptr.vmem [resolvable:$true] %s27
      %30 = dma.hbm_to_vmem [thread:$0]  %s1, 256, %s28, [#allocation6]
    $region9: #{tpu_custom_call.1} parent=1 // pred_fallthru
      _
    // Predicated region
    $region10: #{tpu_custom_call.1} parent=1 // pred_check
      _
    $region11: #{tpu_custom_call.1} parent=1 // pred_check_branch
      %32 = sbr.rel (0) target = $region13
    $region12: #{tpu_custom_call.1} parent=1 // pred_region
      %s34 = ssub.s32 256, 256
      %35 = vsyncadd [#allocation6], %s34
      %s37 = sshll.u32 [#allocation7], 4
      %s38 = int_to_ptr.vmem [resolvable:$true] %s37
      %40 = dma.hbm_to_vmem [thread:$0]  %s2, 256, %s38, [#allocation6]
    $region13: #{tpu_custom_call.1} parent=1 // pred_fallthru
      _
    // Predicated region
    $region14: #{tpu_custom_call.1} parent=1 // pred_check
      _
    $region15: #{tpu_custom_call.1} parent=1 // pred_check_branch
      %42 = sbr.rel (0) target = $region17
    $region16: #{tpu_custom_call.1} parent=1 // pred_region
      %43 = dma.done [#allocation3], 256
    $region17: #{tpu_custom_call.1} parent=1 // pred_fallthru
      _
    // Predicated region
    $region18: #{tpu_custom_call.1} parent=1 // pred_check
      _
    $region19: #{tpu_custom_call.1} parent=1 // pred_check_branch
      %45 = sbr.rel (0) target = $region21
    $region20: #{tpu_custom_call.1} parent=1 // pred_region
      %46 = dma.done [#allocation6], 256
    $region21: #{tpu_custom_call.1} parent=1 // pred_fallthru
      _
    // Predicated region
    $region22: #{tpu_custom_call.1} parent=1 // pred_check
      _
    $region23: #{tpu_custom_call.1} parent=1 // pred_check_branch
      %48 = sbr.rel (0) target = $region25
    $region24: #{tpu_custom_call.1} parent=1 // pred_region
      %49 = dma.done [#allocation6], 256
    $region25: #{tpu_custom_call.1} parent=1 // pred_fallthru
      _
    %v50 = vld [vmem:[#allocation2] sm:$0xff]
    %v51 = vld [vmem:[#allocation2 + $0x8] sm:$0xff]
    %v52 = vld [vmem:[#allocation5] sm:$0xff]
    %v53 = vld [vmem:[#allocation5 + $0x8] sm:$0xff]
    %v54 = vadd.f32 %v50, %v52
    %v55 = vadd.f32 %v51, %v53
    %v56 = vld [vmem:[#allocation7] sm:$0xff]
    %v57 = vld [vmem:[#allocation7 + $0x8] sm:$0xff]
    %v58 = vadd.f32 %v54, %v56
    %v59 = vadd.f32 %v55, %v57
    %60 = vst [vmem:[#allocation8] sm:$0xff] %v58
    %61 = vst [vmem:[#allocation8 + $0x8] sm:$0xff] %v59
    // Predicated region
    $region26: #{tpu_custom_call.1} parent=1 // pred_check
      _
    $region27: #{tpu_custom_call.1} parent=1 // pred_check_branch
      %63 = sbr.rel (0) target = $region29
    $region28: #{tpu_custom_call.1} parent=1 // pred_region
      %s65 = ssub.s32 256, 256
      %66 = vsyncadd [#allocation4], %s65
      %s68 = sshll.u32 [#allocation8], 4
      %s69 = int_to_ptr.vmem [resolvable:$true] %s68
      %71 = dma.vmem_to_hbm [thread:$0]  %s69, 256, %s3, [#allocation4]
    $region29: #{tpu_custom_call.1} parent=1 // pred_fallthru
      _
    // Predicated region
    $region30: #{tpu_custom_call.1} parent=1 // pred_check
      _
    $region31: #{tpu_custom_call.1} parent=1 // pred_check_branch
      %73 = sbr.rel (0) target = $region33
    $region32: #{tpu_custom_call.1} parent=1 // pred_region
      %74 = dma.done [#allocation4], 256
    $region33: #{tpu_custom_call.1} parent=1 // pred_fallthru
      _
    %75 = vsyncpa [#allocation3], 1
    %76 = vsyncpa [#allocation6], 1
    %77 = vsyncpa [#allocation4], 1

</llo_original>
